<compile_context>
chip_gen: v5e
topology: v5e:2x2
jax: 0.10.0
libtpu: 0.0.40
codegen_flags: <defaults>
</compile_context>

<pallas_src>
import math

import jax
import jax.numpy as jnp
from jax.experimental import pallas as pl
from jax.experimental.pallas import tpu as pltpu


def _round_up(x, m):
    return ((x + m - 1) // m) * m


def _right_sized_vmem_limit(block_specs, scratch_bytes=0):
    """Right-size vmem_limit_bytes from actual block shapes.

    block_specs: iterable of (shape, dtype) for every pipelined block
    (each is double-buffered by the Pallas pipeline).
    """
    buffered = sum(2 * math.prod(s) * jnp.dtype(d).itemsize for s, d in block_specs)
    # 2x headroom for layout padding / compiler temporaries, 8 MiB floor,
    # 64 MiB cap (v7x physical VMEM per TensorCore).
    return int(min(max(2 * (buffered + scratch_bytes) + (4 << 20), 8 << 20), 64 << 20))


# --------------------------------------------------------------------------
# Stage 1: edge binarization.
#   edge_bin = ((embeds | edge_feature) @ (W | -0.5) > 0)
# Gridded over E tiles; each tile computed exactly once.
# --------------------------------------------------------------------------
def _edge_kernel(emb_ref, w_ref, edge_ref):
    scores = jnp.dot(emb_ref[...], w_ref[...], preferred_element_type=jnp.float32)
    edge_ref[...] = (scores > 0.0).astype(edge_ref.dtype)


# --------------------------------------------------------------------------
# Stage 2: clause reduction.
#   clause = (function_mask @ edge_bin > 0)
# Grid (C tiles [parallel], E tiles [arbitrary, reduction last]).
# f32 accumulator in VMEM scratch; init at k==0, threshold+store at k==last.
# --------------------------------------------------------------------------
def _clause_kernel(fmask_ref, edge_ref, out_ref, acc_ref):
    k = pl.program_id(1)

    @pl.when(k == 0)
    def _init():
        acc_ref[...] = jnp.zeros_like(acc_ref)

    acc_ref[...] += jnp.dot(fmask_ref[...], edge_ref[...],
                            preferred_element_type=jnp.float32)

    @pl.when(k == pl.num_programs(1) - 1)
    def _finalize():
        out_ref[...] = (acc_ref[...] > 0.0).astype(out_ref.dtype)


def supervised_graphsage_forward(embeds, weight, edge_feature, function_mask,
                                 compute_dtype=jnp.float32):
    """Forward pass of SupervisedGraphSage (is_train=True path).

    compute_dtype: dtype of the MXU operands (accumulation is always f32).
      f32 (default) matches the PyTorch reference bit-for-bit at thresholds.
      bf16 halves HBM/VMEM bytes for the mask/edge streams (recommended on
      v6e/v7x at scale; scores near the threshold may flip vs. f32).
    """
    E, A = embeds.shape
    A2, F = weight.shape
    assert A == A2
    C, E2 = function_mask.shape
    assert E == E2
    assert edge_feature.shape == (E, 1)

    # --- padded / tiled geometry -------------------------------------------
    f_pad = _round_up(F, 128)                      # lane-dense output & MXU N-dim
    te = _round_up(E, 8) if E <= 512 else 512      # E tile (sublane-aligned)
    e_pad = _round_up(E, te)
    tc = _round_up(C, 8) if C <= 512 else 512      # C tile
    c_pad = _round_up(C, tc)
    a_aug = A + 1                                  # + folded edge-bias column

    # --- layout plumbing (host-side, zero-padded) ---------------------------
    # Fold the per-edge bias into the first matmul:
    #   scores + (1 - ef)/2 > 0.5   <=>   scores - ef/2 > 0
    #   = [embeds | ef] @ [[W], [-0.5 * 1_F]] > 0
    emb_aug = jnp.zeros((e_pad, a_aug), compute_dtype)
    emb_aug = emb_aug.at[:E, :A].set(embeds.astype(compute_dtype))
    emb_aug = emb_aug.at[:E, A].set(edge_feature[:, 0].astype(compute_dtype))

    w_aug = jnp.zeros((a_aug, f_pad), compute_dtype)
    w_aug = w_aug.at[:A, :F].set(weight.astype(compute_dtype))
    w_aug = w_aug.at[A, :F].set(jnp.asarray(-0.5, compute_dtype))

    fmask = jnp.zeros((c_pad, e_pad), compute_dtype)
    fmask = fmask.at[:C, :E].set(function_mask.astype(compute_dtype))

    # --- stage 1: edge binarization -----------------------------------------
    s1_blocks = [((te, a_aug), compute_dtype),
                 ((a_aug, f_pad), compute_dtype),
                 ((te, f_pad), compute_dtype)]
    edge_bin = pl.pallas_call(
        _edge_kernel,
        out_shape=jax.ShapeDtypeStruct((e_pad, f_pad), compute_dtype),
        grid_spec=pltpu.PrefetchScalarGridSpec(
            num_scalar_prefetch=0,
            grid=(e_pad // te,),
            in_specs=[pl.BlockSpec((te, a_aug), lambda i: (i, 0)),
                      pl.BlockSpec((a_aug, f_pad), lambda i: (0, 0))],
            out_specs=pl.BlockSpec((te, f_pad), lambda i: (i, 0)),
        ),
        compiler_params=pltpu.CompilerParams(
            dimension_semantics=("parallel",),
            vmem_limit_bytes=_right_sized_vmem_limit(s1_blocks),
        ),
    )(emb_aug, w_aug)

    # --- stage 2: clause reduction ------------------------------------------
    acc_bytes = tc * f_pad * 4
    s2_blocks = [((tc, te), compute_dtype),
                 ((te, f_pad), compute_dtype),
                 ((tc, f_pad), jnp.float32)]
    clause = pl.pallas_call(
        _clause_kernel,
        out_shape=jax.ShapeDtypeStruct((c_pad, f_pad), jnp.float32),
        grid_spec=pltpu.PrefetchScalarGridSpec(
            num_scalar_prefetch=0,
            grid=(c_pad // tc, e_pad // te),
            in_specs=[pl.BlockSpec((tc, te), lambda i, k: (i, k)),
                      pl.BlockSpec((te, f_pad), lambda i, k: (k, 0))],
            out_specs=pl.BlockSpec((tc, f_pad), lambda i, k: (i, 0)),
            scratch_shapes=[pltpu.VMEM((tc, f_pad), jnp.float32)],
        ),
        compiler_params=pltpu.CompilerParams(
            dimension_semantics=("parallel", "arbitrary"),
            vmem_limit_bytes=_right_sized_vmem_limit(s2_blocks, acc_bytes),
        ),
    )(fmask, edge_bin)

    return clause[:C, :F]


def _reference(embeds, weight, edge_feature, function_mask):
    scores = jnp.dot(embeds, weight, precision=jax.lax.Precision.HIGHEST)
    edge_values = scores + (1.0 - edge_feature) / 2.0
    edge_bin = (edge_values > 0.5).astype(jnp.float32)
    clause = jnp.dot(function_mask, edge_bin, precision=jax.lax.Precision.HIGHEST)
    return (clause > 0.0).astype(jnp.float32)


if __name__ == "__main__":
    # Small, forward-consistent shapes.
    E = 64    # number of edges (rows of embeds / edge_feature)
    A = 32    # enc.node_adj_lists.size (embedding dim)
    F = 8     # feature_dim (columns of self.weight)
    C = 16    # number of functions / clauses

    key = jax.random.PRNGKey(0)
    k_emb, k_w, k_ef, k_fm = jax.random.split(key, 4)

    # Quantize embeds / weight to small dyadic grids so every matmul partial
    # sum is exact in f32 (and bf16-representable); the binarized outputs then
    # match the reference bit-for-bit regardless of accumulation order.
    embeds = jnp.round(jax.random.normal(k_emb, (E, A), dtype=jnp.float32) * 8.0) / 8.0

    # Deterministic Xavier-uniform-style init for self.weight (A, F).
    bound = (6.0 / (A + F)) ** 0.5
    weight = jnp.round(
        jax.random.uniform(k_w, (A, F), dtype=jnp.float32,
                           minval=-bound, maxval=bound) * 64.0) / 64.0

    # edge_feature is a signed literal feature in {-1, +1}, shape (E, 1).
    edge_feature = jnp.where(
        jax.random.bernoulli(k_ef, 0.5, (E, 1)), 1.0, -1.0
    ).astype(jnp.float32)

    # function_mask: binary (C, E) clause-to-edge incidence matrix.
    function_mask = jax.random.bernoulli(k_fm, 0.2, (C, E)).astype(jnp.float32)

    out = supervised_graphsage_forward(embeds, weight, edge_feature, function_mask)
    out = jax.block_until_ready(out)

    ref = _reference(embeds, weight, edge_feature, function_mask)
    assert out.shape == (C, F)
    assert jnp.allclose(out, ref), "Pallas kernel mismatch vs reference"

    print("KERNEL_OK")
</pallas_src>

<mosaic_0001>
module attributes {stable_mosaic.version = 11 : i64} {
  func.func @_edge_kernel(%arg0: i32, %arg1: memref<64x33xf32, #tpu.memory_space<vmem>>, %arg2: memref<33x128xf32, #tpu.memory_space<vmem>>, %arg3: memref<64x128xf32, #tpu.memory_space<vmem>>) attributes {dimension_semantics = [#tpu.dimension_semantics<parallel>], iteration_bounds = array<i64: 1>, scalar_prefetch = 0 : i64, scratch_operands = 0 : i64, tpu.core_type = #tpu.core_type<tc>, window_params = [{transform_indices = @transform_0, window_bounds = array<i64: 64, 33>}, {pipeline_mode = #tpu.pipeline_mode<synchronous>, transform_indices = @transform_1, window_bounds = array<i64: 33, 128>}, {transform_indices = @transform_2, window_bounds = array<i64: 64, 128>}]} {
    %c0 = arith.constant 0 : index
    %c0_0 = arith.constant 0 : index
    %0 = vector.load %arg1[%c0, %c0_0] : memref<64x33xf32, #tpu.memory_space<vmem>>, vector<64x33xf32>
    %c0_1 = arith.constant 0 : index
    %c0_2 = arith.constant 0 : index
    %1 = vector.load %arg2[%c0_1, %c0_2] : memref<33x128xf32, #tpu.memory_space<vmem>>, vector<33x128xf32>
    %cst = arith.constant dense<0.000000e+00> : vector<64x128xf32>
    %2 = tpu.matmul %0, %1, %cst {dimension_numbers = #tpu.dot_dimension_numbers<[1], [0], [0], [1], [0, 0, 1, 1], [], []>} : vector<64x33xf32>, vector<33x128xf32>, vector<64x128xf32> -> vector<64x128xf32>
    %cst_3 = arith.constant 0.000000e+00 : f32
    %3 = vector.broadcast %cst_3 : f32 to vector<64x128xf32>
    %4 = arith.cmpf ogt, %2, %3 : vector<64x128xf32>
    %5 = arith.extui %4 : vector<64x128xi1> to vector<64x128xi32>
    %6 = arith.sitofp %5 : vector<64x128xi32> to vector<64x128xf32>
    %c0_4 = arith.constant 0 : index
    %c0_5 = arith.constant 0 : index
    %7 = vector.load %arg3[%c0_4, %c0_5] : memref<64x128xf32, #tpu.memory_space<vmem>>, vector<64x128xf32>
    tpu.vector_store %arg3[%c0_4, %c0_5], %6 {strides = array<i32>} : memref<64x128xf32, #tpu.memory_space<vmem>>, vector<64x128xf32>,
    return
  }
  func.func @transform_0(%arg0: i32) -> (i32, i32) {
    %c0_i32 = arith.constant 0 : i32
    %c0_i32_0 = arith.constant 0 : i32
    return %arg0, %c0_i32 : i32, i32
  }
  func.func @transform_1(%arg0: i32) -> (i32, i32) {
    %c0_i32 = arith.constant 0 : i32
    %c0_i32_0 = arith.constant 0 : i32
    %c0_i32_1 = arith.constant 0 : i32
    return %c0_i32, %c0_i32_0 : i32, i32
  }
  func.func @transform_2(%arg0: i32) -> (i32, i32) {
    %c0_i32 = arith.constant 0 : i32
    %c0_i32_0 = arith.constant 0 : i32
    return %arg0, %c0_i32 : i32, i32
  }
}

</mosaic_0001>

<llo_original>
// kernel: tpu_custom_call.1
$region0: #{tpu_custom_call.1}
  #allocation0 [shape = 'u32[]', space=smem, size = 0x4, offset = 0x4, fixed_abs, tag = 'smem constant byte address 0x4 - core index']
  #allocation1 [shape = 'u32[72,128]{1,0:T(1,128)}', space=vmem, size = 0x9000, scoped, tag = 'internal scratch']
  %s0 = inlined_call_operand.vmem [shape: f32[64,33], index: 0, kind: input, shape index: {}]
  %s1 = inlined_call_operand.vmem [shape: f32[33,128], index: 1, kind: input, shape index: {}]
  %s2 = inlined_call_operand.hbm [shape: f32[64,128], index: 2, kind: output, shape index: {}]
  %s3 = sld [smem:[#allocation0]]
  $region18: #{tpu_custom_call.1} parent=0
    _
  %s5 = ssub.s32 1, %s3
  %s6 = scalar_select 0, %s5, %s3
  $region1: #{tpu_custom_call.1} parent=0
    #allocation2 [shape = 'u8[32768]{0}', space=vmem, size = 0x8000, scoped, tag = 'output window, operand 0, single buffered']
    #allocation3 [shape = 's32[1]{0}', space=sflag, size = 0x4, scoped, tag = 'scoped memory for tpu_custom_call.1']
    %7 = vsyncpa [#allocation3], 0
    // Predicated region
    $region2: #{tpu_custom_call.1} parent=1 // pred_check
      _
    $region3: #{tpu_custom_call.1} parent=1 // pred_check_branch
      %9 = sbr.rel (0) target = $region5
    $region4: #{tpu_custom_call.1} parent=1 // pred_region
      _
    $region5: #{tpu_custom_call.1} parent=1 // pred_fallthru
      _
    // Predicated region
    $region6: #{tpu_custom_call.1} parent=1 // pred_check
      _
    $region7: #{tpu_custom_call.1} parent=1 // pred_check_branch
      %11 = sbr.rel (0) target = $region9
    $region8: #{tpu_custom_call.1} parent=1 // pred_region
      _
    $region9: #{tpu_custom_call.1} parent=1 // pred_fallthru
      _
    %v12 = vld [vmem:[%s0] sm:$0xff]
    %v13 = vld [vmem:[%s0 + $0x8] sm:$0xff]
    %v14 = vld [vmem:[%s0 + $0x10] sm:$0xff]
    %v15 = vld [vmem:[%s0 + $0x18] sm:$0xff]
    %v16 = vld [vmem:[%s0 + $0x20] sm:$0xff]
    %v17 = vld [vmem:[%s0 + $0x28] sm:$0xff]
    %v18 = vld [vmem:[%s0 + $0x30] sm:$0xff]
    %v19 = vld [vmem:[%s0 + $0x38] sm:$0xff]
    %v20 = vld [vmem:[%s1] sm:$0xff]
    %v21 = vld [vmem:[%s1 + $0x8] sm:$0xff]
    %v22 = vld [vmem:[%s1 + $0x10] sm:$0xff]
    %v23 = vld [vmem:[%s1 + $0x18] sm:$0xff]
    %v24 = vld [vmem:[%s1 + $0x20] sm:$0x1]
    %vm25 = vcmask 269312
    %v27 = vsel %vm25, %v12, 0
    %v30 = vsel %vm25, %v13, 0
    %v33 = vsel %vm25, %v14, 0
    %v36 = vsel %vm25, %v15, 0
    %v39 = vsel %vm25, %v16, 0
    %v42 = vsel %vm25, %v17, 0
    %v45 = vsel %vm25, %v18, 0
    %v48 = vsel %vm25, %v19, 0
    %vm50 = vcmask 1040384
    %v52 = vsel %vm50, %v24, 0
    %54 = vmatpush.msra.mxu0 0.0
    %55 = vmatpush.msra.mxu0 0.0
    %56 = vmatpush.msra.mxu0 0.0
    %57 = vmatpush.msra.mxu0 0.0
    %58 = vmatpush.msra.mxu0 0.0
    %59 = vmatpush.msra.mxu0 0.0
    %60 = vmatpush.msra.mxu0 0.0
    %61 = vmatpush.msra.mxu0 0.0
    %62 = vmatpush.msra.mxu0 0.0
    %63 = vmatpush.msra.mxu0 0.0
    %64 = vmatpush.msra.mxu0 0.0
    %65 = vmatpush.msra.mxu0 %v52
    %66 = vmatpush.msra.mxu0 %v23
    %67 = vmatpush.msra.mxu0 %v22
    %68 = vmatpush.msra.mxu0 %v21
    %69 = vmatpush.msra.mxu0 %v20
    %70 = vmatmul.f32.gmra.mxu0 %v27
    %v71 = vpop.f32.mrf.mxu0
    %v72 = vadd.f32 0.0, %v71
    %73 = vmatmul.f32.gmra.mxu0 %v30
    %v74 = vpop.f32.mrf.mxu0
    %v75 = vadd.f32 0.0, %v74
    %76 = vmatmul.f32.gmra.mxu0 %v33
    %v77 = vpop.f32.mrf.mxu0
    %v78 = vadd.f32 0.0, %v77
    %79 = vmatmul.f32.gmra.mxu0 %v36
    %v80 = vpop.f32.mrf.mxu0
    %v81 = vadd.f32 0.0, %v80
    %82 = vmatmul.f32.gmra.mxu0 %v39
    %v83 = vpop.f32.mrf.mxu0
    %v84 = vadd.f32 0.0, %v83
    %85 = vmatmul.f32.gmra.mxu0 %v42
    %v86 = vpop.f32.mrf.mxu0
    %v87 = vadd.f32 0.0, %v86
    %88 = vmatmul.f32.gmra.mxu0 %v45
    %v89 = vpop.f32.mrf.mxu0
    %v90 = vadd.f32 0.0, %v89
    %91 = vmatmul.f32.gmra.mxu0 %v48
    %v92 = vpop.f32.mrf.mxu0
    %v93 = vadd.f32 0.0, %v92
    %94 = vdwg.mxu0
    %vm95 = vcmp.gt.f32.partialorder %v72, 0.0
    %vm96 = vcmp.gt.f32.partialorder %v75, 0.0
    %vm97 = vcmp.gt.f32.partialorder %v78, 0.0
    %vm98 = vcmp.gt.f32.partialorder %v81, 0.0
    %vm99 = vcmp.gt.f32.partialorder %v84, 0.0
    %vm100 = vcmp.gt.f32.partialorder %v87, 0.0
    %vm101 = vcmp.gt.f32.partialorder %v90, 0.0
    %vm102 = vcmp.gt.f32.partialorder %v93, 0.0
    %v103 = vsel %vm95, 1, 0
    %v104 = vsel %vm96, 1, 0
    %v105 = vsel %vm97, 1, 0
    %v106 = vsel %vm98, 1, 0
    %v107 = vsel %vm99, 1, 0
    %v108 = vsel %vm100, 1, 0
    %v109 = vsel %vm101, 1, 0
    %v110 = vsel %vm102, 1, 0
    %v111 = vcvt.s32.f32 %v103
    %v112 = vcvt.s32.f32 %v104
    %v113 = vcvt.s32.f32 %v105
    %v114 = vcvt.s32.f32 %v106
    %v115 = vcvt.s32.f32 %v107
    %v116 = vcvt.s32.f32 %v108
    %v117 = vcvt.s32.f32 %v109
    %v118 = vcvt.s32.f32 %v110
    %119 = vst [vmem:[#allocation2] sm:$0xff] %v111
    %120 = vst [vmem:[#allocation2 + $0x8] sm:$0xff] %v112
    %121 = vst [vmem:[#allocation2 + $0x10] sm:$0xff] %v113
    %122 = vst [vmem:[#allocation2 + $0x18] sm:$0xff] %v114
    %123 = vst [vmem:[#allocation2 + $0x20] sm:$0xff] %v115
    %124 = vst [vmem:[#allocation2 + $0x28] sm:$0xff] %v116
    %125 = vst [vmem:[#allocation2 + $0x30] sm:$0xff] %v117
    %126 = vst [vmem:[#allocation2 + $0x38] sm:$0xff] %v118
    // Predicated region
    $region10: #{tpu_custom_call.1} parent=1 // pred_check
      _
    $region11: #{tpu_custom_call.1} parent=1 // pred_check_branch
      %128 = sbr.rel (0) target = $region13
    $region12: #{tpu_custom_call.1} parent=1 // pred_region
      %130 = vsyncadd [#allocation3], 0
      %s131 = sshll.u32 [#allocation2], 4
      %s132 = int_to_ptr.vmem [resolvable:$true] %s131
      %s133 = sshll.u32 %s2, 4
      %s134 = int_to_ptr.hbm [resolvable:$true] %s133
      %139 = dma.vmem_to_hbm [thread:$0]  %s132, 1024, %s134, [#allocation3], 128, 128, 8
    $region13: #{tpu_custom_call.1} parent=1 // pred_fallthru
      _
    // Predicated region
    $region14: #{tpu_custom_call.1} parent=1 // pred_check
      _
    $region15: #{tpu_custom_call.1} parent=1 // pred_check_branch
      %141 = sbr.rel (0) target = $region17
    $region16: #{tpu_custom_call.1} parent=1 // pred_region
      %143 = dma.done [#allocation3], 1024
    $region17: #{tpu_custom_call.1} parent=1 // pred_fallthru
      _
    %144 = vsyncpa [#allocation3], 1

</llo_original>
